<compile_context>
chip_gen: v5e
topology: v5e:2x2
jax: 0.10.0
libtpu: 0.0.40
codegen_flags: <defaults>
</compile_context>

<pallas_src>
import jax
import jax.numpy as jnp
from jax.experimental import pallas as pl
from jax.experimental.pallas import tpu as pltpu


# ----------------------------------------------------------------------------
# Fused Pallas kernel: one grid step == one batch TILE (Bt rows), both branches.
# ----------------------------------------------------------------------------
def _fused_branches_kernel(x_ref, wstem_ref, t_ref, m_ref, wheads_ref, out_ref):
    # ---------------- image branch: 1x1 stem + ReLU + GAP --------------------
    # x keeps NCHW's natural per-element [C, HW] layout: HW on the lane axis
    # (lane-dense, HW % 128 == 0), C on sublanes -> no wrapper transpose.
    x = x_ref[...]                                    # [Bt, Cin, HW] f32
    w_t = wstem_ref[...]                              # [Cs,  Cin]    f32
    _, c_in, hw = x.shape
    if c_in <= 8:
        # Toy-sized contraction (K = Cin = 4): an MXU pass would be pure
        # pipeline-fill latency, so unroll as VPU broadcast multiply-adds in
        # f32 (v5e has no bf16 VALU path).
        h = x[:, 0:1, :] * w_t[None, :, 0:1]          # [Bt, Cs, HW]
        for c in range(1, c_in):
            h = h + x[:, c:c + 1, :] * w_t[None, :, c:c + 1]
    else:
        # Real channel counts: batched MXU contraction, bf16 in / f32 accumulate.
        h = jnp.einsum('sc,bch->bsh', w_t.astype(jnp.bfloat16),
                       x.astype(jnp.bfloat16),
                       preferred_element_type=jnp.float32)
    h = jnp.maximum(h, 0.0)                           # ReLU
    # GAP: lane-axis reduce; 1/HW applied here in f32 (NOT folded into bf16
    # head weights -> better parity with an f32 reference).
    pooled_img = jnp.sum(h, axis=-1) * (1.0 / hw)     # [Bt, Cs] f32

    # ---------------- text branch: masked mean pool (VPU/XLU, no M=1 MXU dot) -
    t = t_ref[...]                                    # [Bt, L, Dt] f32
    m = m_ref[...]                                    # [Bt, L]     f32
    num = jnp.sum(t * m[:, :, None], axis=1)          # [Bt, Dt]  sublane reduce
    # TODO(synk): reference Bert pooling assumes nonzero mask rows; the eps only
    # keeps padded / all-zero rows finite instead of erroring.
    denom = jnp.sum(m, axis=1, keepdims=True) + 1e-6  # [Bt, 1]
    pooled_txt = num / denom                          # exact f32 divide

    # ---------------- fused heads: single MXU pass + one lane-dense store ----
    # cat(pooled_img, pooled_txt) @ block-diag weight gives
    #   out[:, 0:P]   == cat(img_lay4, img_lay3, img_lay2)   (zero-padded to P)
    #   out[:, P:2P]  == cat(text_1x2, text_1x1, text_1x3)   (zero-padded to P)
    pooled = jnp.concatenate([pooled_img, pooled_txt], axis=1)   # [Bt, Cs+Dt]
    out_ref[...] = jnp.dot(pooled.astype(jnp.bfloat16), wheads_ref[...],
                           preferred_element_type=jnp.float32)   # [Bt, 2P]


# ----------------------------------------------------------------------------
# Wrapper ("build_resnet" forward, eval mode)
# ----------------------------------------------------------------------------
class BuildResnetPallas:
    def __init__(self, key,
                 c_in=4, c_stem=32, img_hw=256,
                 d_lay4=64, d_lay3=32, d_lay2=16,      # stand-ins for 2048/1024/512
                 d_txt=32,
                 d_t1x1=64, d_t1x2=32, d_t1x3=16,      # text heads
                 fusion=True, batch_tile=8):
        self.fusion = fusion
        self.img_hw = img_hw
        self.batch_tile = batch_tile
        ks = jax.random.split(key, 9)
        s = 0.05

        # Stem weight stored pre-transposed [Cs, Cin] so per-input-channel
        # columns broadcast lane-wise in the kernel without a transpose.
        w_stem = s * jax.random.normal(ks[0], (c_in, c_stem), jnp.float32)
        self.w_stem_t = jnp.transpose(w_stem)                     # [Cs, Cin] f32

        w_lay4 = s * jax.random.normal(ks[1], (c_stem, d_lay4), jnp.float32)
        w_lay3 = s * jax.random.normal(ks[2], (c_stem, d_lay3), jnp.float32)
        w_lay2 = s * jax.random.normal(ks[3], (c_stem, d_lay2), jnp.float32)
        w_t1x1 = s * jax.random.normal(ks[4], (d_txt, d_t1x1), jnp.float32)
        w_t1x2 = s * jax.random.normal(ks[5], (d_txt, d_t1x2), jnp.float32)
        w_t1x3 = s * jax.random.normal(ks[6], (d_txt, d_t1x3), jnp.float32)

        # Head weights in the exact torch.cat order of the original forward:
        #   img_glo  = cat(img_lay4, img_lay3, img_lay2)
        #   text_glo = cat(text_1x2, text_1x1, text_1x3)
        img_w = jnp.concatenate([w_lay4, w_lay3, w_lay2], axis=1)  # [Cs, 112]
        txt_w = jnp.concatenate([w_t1x2, w_t1x1, w_t1x3], axis=1)  # [Dt, 112]
        self.img_width = img_w.shape[1]
        self.txt_width = txt_w.shape[1]
        P = 128 * pl.cdiv(max(self.img_width, self.txt_width), 128)
        self.head_pad = P
        # Block-diagonal fused head weight: img heads write lanes [0,P), text
        # heads write lanes [P,2P) -> both branches finish in ONE MXU pass and
        # ONE unmasked [Bt, 2P] store per tile.
        wh = jnp.zeros((c_stem + d_txt, 2 * P), jnp.float32)
        wh = wh.at[:c_stem, :self.img_width].set(img_w)
        wh = wh.at[c_stem:, P:P + self.txt_width].set(txt_w)
        self.w_heads = wh.astype(jnp.bfloat16)

        self._c_stem = c_stem
        self._d_txt = d_txt
        self._d_lay4 = d_lay4
        self._d_t1x2 = d_t1x2
        self._d_t1x1 = d_t1x1

        # conv2 / conv3 / sigmoid exist in the original __init__ but are never
        # applied in forward(); kept only as independent, unused parameters.
        embed = d_lay4 + d_lay3 + d_lay2
        self.conv2_w = s * jax.random.normal(ks[7], (1, embed, 1), jnp.float32)
        self.conv3_w = s * jax.random.normal(ks[8], (1, embed, 1), jnp.float32)

    def __call__(self, img, text, mask):
        B, C, H, W = img.shape
        HW = H * W
        assert HW == self.img_hw
        assert HW % 128 == 0, "lane-dense image layout needs H*W % 128 == 0"
        L = text.shape[1]
        d_txt = text.shape[2]
        assert d_txt == self._d_txt
        c_stem = self._c_stem
        P = self.head_pad

        Bt = self.batch_tile
        n_steps = pl.cdiv(B, Bt)
        B_pad = Bt * n_steps

        # Glue: [B,C,H,W] -> [B,C,HW] is a free contiguous reshape (no transpose
        # pass).  Inputs stay f32: no extra wrapper cast pass over HBM.
        x = img.reshape(B, C, HW)
        t = text
        m = mask.astype(jnp.float32)
        if B_pad != B:                                 # pad batch to a full tile
            x = jnp.pad(x, ((0, B_pad - B), (0, 0), (0, 0)))
            t = jnp.pad(t, ((0, B_pad - B), (0, 0), (0, 0)))
            m = jnp.pad(m, ((0, B_pad - B), (0, 0)))

        def const_spec(shape, nbytes):
            # Constant-block-index weights: single-buffer when big (a real-size
            # fused head weight, e.g. 2048x~3584 bf16 ~ 14.7 MiB, would
            # otherwise be double-buffered against v7x's 64 MiB VMEM).  Toy-size
            # weights keep the default pipeline.
            if nbytes >= (1 << 20):
                return pl.BlockSpec(shape, lambda b: (0,) * len(shape),
                                    pipeline_mode=pl.Buffered(1))
            return pl.BlockSpec(shape, lambda b: (0,) * len(shape))

        out = pl.pallas_call(
            _fused_branches_kernel,
            out_shape=jax.ShapeDtypeStruct((B_pad, 2 * P), jnp.float32),
            grid=(n_steps,),
            in_specs=[
                pl.BlockSpec((Bt, C, HW), lambda b: (b, 0, 0)),      # image tile
                const_spec((c_stem, C), self.w_stem_t.size * 4),     # stem W^T
                pl.BlockSpec((Bt, L, d_txt), lambda b: (b, 0, 0)),   # text tile
                pl.BlockSpec((Bt, L), lambda b: (b, 0)),             # mask tile
                const_spec((c_stem + d_txt, 2 * P),
                           self.w_heads.size * 2),                   # fused heads
            ],
            out_specs=pl.BlockSpec((Bt, 2 * P), lambda b: (b, 0)),
            compiler_params=pltpu.CompilerParams(
                # shard the batch-tile grid over v7x's 2 TCs only when there is
                # more than one step of non-trivial work.
                dimension_semantics=(
                    ("parallel",) if n_steps >= 2 else ("arbitrary",)),
                vmem_limit_bytes=32 * 1024 * 1024),
        )(x, self.w_stem_t, t, m, self.w_heads)

        out = out[:B]                                  # drop batch padding
        img_part = out[:, :P]
        txt_part = out[:, P:]
        if self.fusion:
            img_glo = img_part[:, :self.img_width]     # cat(lay4, lay3, lay2)
            text_glo = txt_part[:, :self.txt_width]    # cat(t1x2, t1x1, t1x3)
        else:
            img_glo = img_part[:, :self._d_lay4]                               # img_lay4
            text_glo = txt_part[:, self._d_t1x2:self._d_t1x2 + self._d_t1x1]   # text_1x1
        # the original's .squeeze(-1).squeeze(-1) (1x1 spatial) is folded into pooling.
        return img_glo, text_glo                       # eval path (not training)


# ----------------------------------------------------------------------------
if __name__ == "__main__":
    key = jax.random.PRNGKey(0)
    k_model, k_img, k_txt = jax.random.split(key, 3)

    B, C, H, W = 2, 4, 16, 16          # image, NCHW like PyTorch
    L, D_TXT = 8, 32                   # text sequence / embedding dim

    model = BuildResnetPallas(k_model, c_in=C, img_hw=H * W, d_txt=D_TXT, fusion=True)

    img = jax.random.normal(k_img, (B, C, H, W), jnp.float32)
    text = jax.random.normal(k_txt, (B, L, D_TXT), jnp.float32)
    mask = jnp.ones((B, L), jnp.float32).at[:, L // 2:].set(
        jnp.array([1.0, 0.0, 1.0, 0.0], jnp.float32))   # some padding positions

    img_glo, text_glo = model(img, text, mask)
    jax.block_until_ready((img_glo, text_glo))

    assert img_glo.shape == (B, 64 + 32 + 16)
    assert text_glo.shape == (B, 32 + 64 + 16)
    print("KERNEL_OK")
</pallas_src>

<mosaic_0001>
module attributes {stable_mosaic.version = 11 : i64} {
  func.func @_fused_branches_kernel(%arg0: i32, %arg1: memref<8x4x256xf32, #tpu.memory_space<vmem>>, %arg2: memref<32x4xf32, #tpu.memory_space<vmem>>, %arg3: memref<8x8x32xf32, #tpu.memory_space<vmem>>, %arg4: memref<8x8xf32, #tpu.memory_space<vmem>>, %arg5: memref<64x256xbf16, #tpu.memory_space<vmem>>, %arg6: memref<8x256xf32, #tpu.memory_space<vmem>>) attributes {dimension_semantics = [#tpu.dimension_semantics<arbitrary>], iteration_bounds = array<i64: 1>, scalar_prefetch = 0 : i64, scratch_operands = 0 : i64, tpu.core_type = #tpu.core_type<tc>, window_params = [{transform_indices = @transform_0, window_bounds = array<i64: 8, 4, 256>}, {pipeline_mode = #tpu.pipeline_mode<synchronous>, transform_indices = @transform_1, window_bounds = array<i64: 32, 4>}, {transform_indices = @transform_2, window_bounds = array<i64: 8, 8, 32>}, {transform_indices = @transform_3, window_bounds = array<i64: 8, 8>}, {pipeline_mode = #tpu.pipeline_mode<synchronous>, transform_indices = @transform_4, window_bounds = array<i64: 64, 256>}, {transform_indices = @transform_5, window_bounds = array<i64: 8, 256>}]} {
    %c0 = arith.constant 0 : index
    %c0_0 = arith.constant 0 : index
    %c0_1 = arith.constant 0 : index
    %0 = vector.load %arg1[%c0, %c0_0, %c0_1] : memref<8x4x256xf32, #tpu.memory_space<vmem>>, vector<8x4x256xf32>
    %c0_2 = arith.constant 0 : index
    %c0_3 = arith.constant 0 : index
    %1 = vector.load %arg2[%c0_2, %c0_3] : memref<32x4xf32, #tpu.memory_space<vmem>>, vector<32x4xf32>
    %2 = vector.extract_strided_slice %0 {offsets = [0, 0, 0], sizes = [8, 1, 256], strides = [1, 1, 1]} : vector<8x4x256xf32> to vector<8x1x256xf32>
    %3 = vector.extract_strided_slice %1 {offsets = [0, 0], sizes = [32, 1], strides = [1, 1]} : vector<32x4xf32> to vector<32x1xf32>
    %4 = vector.shape_cast %3 : vector<32x1xf32> to vector<1x32x1xf32>
    %5 = vector.broadcast %2 : vector<8x1x256xf32> to vector<8x32x256xf32>
    %6 = vector.broadcast %4 : vector<1x32x1xf32> to vector<8x32x256xf32>
    %7 = arith.mulf %5, %6 : vector<8x32x256xf32>
    %8 = vector.extract_strided_slice %0 {offsets = [0, 1, 0], sizes = [8, 1, 256], strides = [1, 1, 1]} : vector<8x4x256xf32> to vector<8x1x256xf32>
    %9 = vector.extract_strided_slice %1 {offsets = [0, 1], sizes = [32, 1], strides = [1, 1]} : vector<32x4xf32> to vector<32x1xf32>
    %10 = vector.shape_cast %9 : vector<32x1xf32> to vector<1x32x1xf32>
    %11 = vector.broadcast %8 : vector<8x1x256xf32> to vector<8x32x256xf32>
    %12 = vector.broadcast %10 : vector<1x32x1xf32> to vector<8x32x256xf32>
    %13 = arith.mulf %11, %12 : vector<8x32x256xf32>
    %14 = arith.addf %7, %13 : vector<8x32x256xf32>
    %15 = vector.extract_strided_slice %0 {offsets = [0, 2, 0], sizes = [8, 1, 256], strides = [1, 1, 1]} : vector<8x4x256xf32> to vector<8x1x256xf32>
    %16 = vector.extract_strided_slice %1 {offsets = [0, 2], sizes = [32, 1], strides = [1, 1]} : vector<32x4xf32> to vector<32x1xf32>
    %17 = vector.shape_cast %16 : vector<32x1xf32> to vector<1x32x1xf32>
    %18 = vector.broadcast %15 : vector<8x1x256xf32> to vector<8x32x256xf32>
    %19 = vector.broadcast %17 : vector<1x32x1xf32> to vector<8x32x256xf32>
    %20 = arith.mulf %18, %19 : vector<8x32x256xf32>
    %21 = arith.addf %14, %20 : vector<8x32x256xf32>
    %22 = vector.extract_strided_slice %0 {offsets = [0, 3, 0], sizes = [8, 1, 256], strides = [1, 1, 1]} : vector<8x4x256xf32> to vector<8x1x256xf32>
    %23 = vector.extract_strided_slice %1 {offsets = [0, 3], sizes = [32, 1], strides = [1, 1]} : vector<32x4xf32> to vector<32x1xf32>
    %24 = vector.shape_cast %23 : vector<32x1xf32> to vector<1x32x1xf32>
    %25 = vector.broadcast %22 : vector<8x1x256xf32> to vector<8x32x256xf32>
    %26 = vector.broadcast %24 : vector<1x32x1xf32> to vector<8x32x256xf32>
    %27 = arith.mulf %25, %26 : vector<8x32x256xf32>
    %28 = arith.addf %21, %27 : vector<8x32x256xf32>
    %cst = arith.constant 0.000000e+00 : f32
    %29 = vector.broadcast %cst : f32 to vector<8x32x256xf32>
    %30 = arith.maximumf %28, %29 : vector<8x32x256xf32>
    %cst_4 = arith.constant dense<0.000000e+00> : vector<8x32xf32>
    %31 = vector.multi_reduction <add>, %30, %cst_4 [2] : vector<8x32x256xf32> to vector<8x32xf32>
    %cst_5 = arith.constant 3.906250e-03 : f32
    %32 = vector.broadcast %cst_5 : f32 to vector<8x32xf32>
    %33 = arith.mulf %31, %32 : vector<8x32xf32>
    %c0_6 = arith.constant 0 : index
    %c0_7 = arith.constant 0 : index
    %c0_8 = arith.constant 0 : index
    %34 = vector.load %arg3[%c0_6, %c0_7, %c0_8] : memref<8x8x32xf32, #tpu.memory_space<vmem>>, vector<8x8x32xf32>
    %c0_9 = arith.constant 0 : index
    %c0_10 = arith.constant 0 : index
    %35 = vector.load %arg4[%c0_9, %c0_10] : memref<8x8xf32, #tpu.memory_space<vmem>>, vector<8x8xf32>
    %36 = vector.shape_cast %35 : vector<8x8xf32> to vector<8x8x1xf32>
    %37 = vector.broadcast %36 : vector<8x8x1xf32> to vector<8x8x32xf32>
    %38 = arith.mulf %34, %37 : vector<8x8x32xf32>
    %cst_11 = arith.constant dense<0.000000e+00> : vector<8x32xf32>
    %39 = vector.multi_reduction <add>, %38, %cst_11 [1] : vector<8x8x32xf32> to vector<8x32xf32>
    %cst_12 = arith.constant dense<0.000000e+00> : vector<8xf32>
    %40 = vector.multi_reduction <add>, %35, %cst_12 [1] : vector<8x8xf32> to vector<8xf32>
    %41 = vector.shape_cast %40 : vector<8xf32> to vector<8x1xf32>
    %cst_13 = arith.constant 9.99999997E-7 : f32
    %42 = vector.broadcast %cst_13 : f32 to vector<8x1xf32>
    %43 = arith.addf %41, %42 : vector<8x1xf32>
    %44 = vector.broadcast %43 : vector<8x1xf32> to vector<8x32xf32>
    %45 = arith.divf %39, %44 : vector<8x32xf32>
    %46 = tpu.concatenate %33, %45 in 1 : vector<8x32xf32>, vector<8x32xf32> -> vector<8x64xf32>
    %47 = arith.truncf %46 : vector<8x64xf32> to vector<8x64xbf16>
    %c0_14 = arith.constant 0 : index
    %c0_15 = arith.constant 0 : index
    %48 = vector.load %arg5[%c0_14, %c0_15] : memref<64x256xbf16, #tpu.memory_space<vmem>>, vector<64x256xbf16>
    %cst_16 = arith.constant dense<0.000000e+00> : vector<8x256xf32>
    %49 = tpu.matmul %47, %48, %cst_16 {dimension_numbers = #tpu.dot_dimension_numbers<[1], [0], [0], [1], [0, 0, 1, 1], [], []>} : vector<8x64xbf16>, vector<64x256xbf16>, vector<8x256xf32> -> vector<8x256xf32>
    %c0_17 = arith.constant 0 : index
    %c0_18 = arith.constant 0 : index
    %50 = vector.load %arg6[%c0_17, %c0_18] : memref<8x256xf32, #tpu.memory_space<vmem>>, vector<8x256xf32>
    tpu.vector_store %arg6[%c0_17, %c0_18], %49 {strides = array<i32>} : memref<8x256xf32, #tpu.memory_space<vmem>>, vector<8x256xf32>,
    return
  }
  func.func @transform_0(%arg0: i32) -> (i32, i32, i32) {
    %c0_i32 = arith.constant 0 : i32
    %c0_i32_0 = arith.constant 0 : i32
    %c0_i32_1 = arith.constant 0 : i32
    return %arg0, %c0_i32, %c0_i32_0 : i32, i32, i32
  }
  func.func @transform_1(%arg0: i32) -> (i32, i32) {
    %c0_i32 = arith.constant 0 : i32
    %c0_i32_0 = arith.constant 0 : i32
    %c0_i32_1 = arith.constant 0 : i32
    return %c0_i32, %c0_i32_0 : i32, i32
  }
  func.func @transform_2(%arg0: i32) -> (i32, i32, i32) {
    %c0_i32 = arith.constant 0 : i32
    %c0_i32_0 = arith.constant 0 : i32
    %c0_i32_1 = arith.constant 0 : i32
    return %arg0, %c0_i32, %c0_i32_0 : i32, i32, i32
  }
  func.func @transform_3(%arg0: i32) -> (i32, i32) {
    %c0_i32 = arith.constant 0 : i32
    %c0_i32_0 = arith.constant 0 : i32
    return %arg0, %c0_i32 : i32, i32
  }
  func.func @transform_4(%arg0: i32) -> (i32, i32) {
    %c0_i32 = arith.constant 0 : i32
    %c0_i32_0 = arith.constant 0 : i32
    %c0_i32_1 = arith.constant 0 : i32
    return %c0_i32, %c0_i32_0 : i32, i32
  }
  func.func @transform_5(%arg0: i32) -> (i32, i32) {
    %c0_i32 = arith.constant 0 : i32
    %c0_i32_0 = arith.constant 0 : i32
    return %arg0, %c0_i32 : i32, i32
  }
}

</mosaic_0001>

<llo_original>
// kernel: tpu_custom_call.1
$region0: #{tpu_custom_call.1}
  #allocation0 [shape = 'u32[]', space=smem, size = 0x4, offset = 0x4, fixed_abs, tag = 'smem constant byte address 0x4 - core index']
  #allocation1 [shape = 'u32[72,128]{1,0:T(1,128)}', space=vmem, size = 0x9000, scoped, tag = 'internal scratch']
  %s0 = inlined_call_operand.hbm [shape: f32[8,4,256], index: 0, kind: input, shape index: {}]
  %s1 = inlined_call_operand.vmem [shape: f32[32,4], index: 1, kind: input, shape index: {}]
  %s2 = inlined_call_operand.hbm [shape: f32[8,8,32], index: 2, kind: input, shape index: {}]
  %s3 = inlined_call_operand.vmem [shape: f32[8,8], index: 3, kind: input, shape index: {}]
  %s4 = inlined_call_operand.hbm [shape: bf16[64,256], index: 4, kind: input, shape index: {}]
  %s5 = inlined_call_operand.hbm [shape: f32[8,256], index: 5, kind: output, shape index: {}]
  %s6 = sld [smem:[#allocation0]]
  $region42: #{tpu_custom_call.1} parent=0
    _
  %s8 = ssub.s32 1, %s6
  %s9 = scalar_select 0, %s8, %s6
  $region1: #{tpu_custom_call.1} parent=0
    #allocation2 [shape = 'u8[32768]{0}', space=vmem, size = 0x8000, scoped, tag = 'input window, operand 0, single buffered']
    #allocation3 [shape = 's32[1]{0}', space=sflag, size = 0x4, scoped, tag = 'scoped memory for tpu_custom_call.1']
    #allocation4 [shape = 's32[1]{0}', space=sflag, size = 0x4, scoped, tag = 'scoped memory for tpu_custom_call.1']
    #allocation5 [shape = 'u8[32768]{0}', space=vmem, size = 0x8000, scoped, tag = 'input window, operand 2, single buffered']
    #allocation6 [shape = 's32[1]{0}', space=sflag, size = 0x4, scoped, tag = 'scoped memory for tpu_custom_call.1']
    #allocation7 [shape = 'u8[32768]{0}', space=vmem, size = 0x8000, scoped, tag = 'input window, operand 4, single buffered']
    #allocation8 [shape = 'u8[8192]{0}', space=vmem, size = 0x2000, scoped, tag = 'output window, operand 0, single buffered']
    %10 = vsyncpa [#allocation3], 0
    %11 = vsyncpa [#allocation6], 0
    %12 = vsyncpa [#allocation4], 0
    // Predicated region
    $region2: #{tpu_custom_call.1} parent=1 // pred_check
      _
    $region3: #{tpu_custom_call.1} parent=1 // pred_check_branch
      %14 = sbr.rel (0) target = $region5
    $region4: #{tpu_custom_call.1} parent=1 // pred_region
      %16 = vsyncadd [#allocation3], 0
      %s17 = sshll.u32 %s0, 4
      %s18 = int_to_ptr.hbm [resolvable:$true] %s17
      %s19 = sshll.u32 [#allocation2], 4
      %s20 = int_to_ptr.vmem [resolvable:$true] %s19
      %25 = dma.hbm_to_vmem [thread:$0]  %s18, 1024, %s20, [#allocation3], 128, 128, 8
    $region5: #{tpu_custom_call.1} parent=1 // pred_fallthru
      _
    // Predicated region
    $region6: #{tpu_custom_call.1} parent=1 // pred_check
      _
    $region7: #{tpu_custom_call.1} parent=1 // pred_check_branch
      %27 = sbr.rel (0) target = $region9
    $region8: #{tpu_custom_call.1} parent=1 // pred_region
      _
    $region9: #{tpu_custom_call.1} parent=1 // pred_fallthru
      _
    // Predicated region
    $region10: #{tpu_custom_call.1} parent=1 // pred_check
      _
    $region11: #{tpu_custom_call.1} parent=1 // pred_check_branch
      %29 = sbr.rel (0) target = $region13
    $region12: #{tpu_custom_call.1} parent=1 // pred_region
      %31 = vsyncadd [#allocation6], 0
      %s32 = sshll.u32 %s2, 4
      %s33 = int_to_ptr.hbm [resolvable:$true] %s32
      %s34 = sshll.u32 [#allocation5], 4
      %s35 = int_to_ptr.vmem [resolvable:$true] %s34
      %40 = dma.hbm_to_vmem [thread:$0]  %s33, 1024, %s35, [#allocation6], 128, 128, 8
    $region13: #{tpu_custom_call.1} parent=1 // pred_fallthru
      _
    // Predicated region
    $region14: #{tpu_custom_call.1} parent=1 // pred_check
      _
    $region15: #{tpu_custom_call.1} parent=1 // pred_check_branch
      %42 = sbr.rel (0) target = $region17
    $region16: #{tpu_custom_call.1} parent=1 // pred_region
      _
    $region17: #{tpu_custom_call.1} parent=1 // pred_fallthru
      _
    // Predicated region
    $region18: #{tpu_custom_call.1} parent=1 // pred_check
      _
    $region19: #{tpu_custom_call.1} parent=1 // pred_check_branch
      %44 = sbr.rel (0) target = $region21
    $region20: #{tpu_custom_call.1} parent=1 // pred_region
      %46 = vsyncadd [#allocation6], 0
      %s47 = sshll.u32 %s4, 4
      %s48 = int_to_ptr.hbm [resolvable:$true] %s47
      %s49 = sshll.u32 [#allocation7], 4
      %s50 = int_to_ptr.vmem [resolvable:$true] %s49
      %55 = dma.hbm_to_vmem [thread:$0]  %s48, 1024, %s50, [#allocation6], 128, 128, 8
    $region21: #{tpu_custom_call.1} parent=1 // pred_fallthru
      _
    // Predicated region
    $region22: #{tpu_custom_call.1} parent=1 // pred_check
      _
    $region23: #{tpu_custom_call.1} parent=1 // pred_check_branch
      %57 = sbr.rel (0) target = $region25
    $region24: #{tpu_custom_call.1} parent=1 // pred_region
      %59 = dma.done [#allocation3], 1024
    $region25: #{tpu_custom_call.1} parent=1 // pred_fallthru
      _
    // Predicated region
    $region26: #{tpu_custom_call.1} parent=1 // pred_check
      _
    $region27: #{tpu_custom_call.1} parent=1 // pred_check_branch
      %61 = sbr.rel (0) target = $region29
    $region28: #{tpu_custom_call.1} parent=1 // pred_region
      %63 = dma.done [#allocation6], 1024
    $region29: #{tpu_custom_call.1} parent=1 // pred_fallthru
      _
    // Predicated region
    $region30: #{tpu_custom_call.1} parent=1 // pred_check
      _
    $region31: #{tpu_custom_call.1} parent=1 // pred_check_branch
      %65 = sbr.rel (0) target = $region33
    $region32: #{tpu_custom_call.1} parent=1 // pred_region
      %67 = dma.done [#allocation6], 1024
    $region33: #{tpu_custom_call.1} parent=1 // pred_fallthru
      _
    %v69 = vld [vmem:[#allocation2] sm:$0xff]
    %v70 = vld [vmem:[#allocation2 + $0x8] sm:$0xff]
    %v71 = vld [vmem:[#allocation2 + $0x10] sm:$0xff]
    %v72 = vld [vmem:[#allocation2 + $0x18] sm:$0xff]
    %v73 = vld [vmem:[#allocation2 + $0x20] sm:$0xff]
    %v74 = vld [vmem:[#allocation2 + $0x28] sm:$0xff]
    %v75 = vld [vmem:[#allocation2 + $0x30] sm:$0xff]
    %v76 = vld [vmem:[#allocation2 + $0x38] sm:$0xff]
    %v77 = vld [vmem:[%s1] sm:$0xff]
    %v78 = vld [vmem:[%s1 + $0x8] sm:$0xff]
    %v79 = vld [vmem:[%s1 + $0x10] sm:$0xff]
    %v80 = vld [vmem:[%s1 + $0x18] sm:$0xff]
    %v89 = vperm.slane %v69, 0
    %v90 = vperm.slane %v69, 4
    %v91 = vperm.slane %v70, 0
    %v92 = vperm.slane %v70, 4
    %v93 = vperm.slane %v71, 0
    %v94 = vperm.slane %v71, 4
    %v95 = vperm.slane %v72, 0
    %v96 = vperm.slane %v72, 4
    %v97 = vperm.slane %v73, 0
    %v98 = vperm.slane %v73, 4
    %v99 = vperm.slane %v74, 0
    %v100 = vperm.slane %v74, 4
    %v101 = vperm.slane %v75, 0
    %v102 = vperm.slane %v75, 4
    %v103 = vperm.slane %v76, 0
    %v104 = vperm.slane %v76, 4
    %v121 = vperm.slane %v89, 0
    %v122 = vperm.slane %v90, 0
    %v123 = vperm.slane %v91, 0
    %v124 = vperm.slane %v92, 0
    %v125 = vperm.slane %v93, 0
    %v126 = vperm.slane %v94, 0
    %v127 = vperm.slane %v95, 0
    %v128 = vperm.slane %v96, 0
    %v129 = vperm.slane %v97, 0
    %v130 = vperm.slane %v98, 0
    %v131 = vperm.slane %v99, 0
    %v132 = vperm.slane %v100, 0
    %v133 = vperm.slane %v101, 0
    %v134 = vperm.slane %v102, 0
    %v135 = vperm.slane %v103, 0
    %v136 = vperm.slane %v104, 0
    %138 = vset.pattern.permute.xlu0 0
    %139 = vperm.xlu0 %138, %v77
    %v140 = vpop.permute.xlu0 %139
    %143 = vset.pattern.permute.xlu0 0
    %144 = vperm.xlu0 %143, %v78
    %v145 = vpop.permute.xlu0 %144
    %148 = vset.pattern.permute.xlu0 0
    %149 = vperm.xlu0 %148, %v79
    %v150 = vpop.permute.xlu0 %149
    %153 = vset.pattern.permute.xlu0 0
    %154 = vperm.xlu0 %153, %v80
    %v155 = vpop.permute.xlu0 %154
    %v157 = vmul.f32 %v121, %v140
    %v158 = vmul.f32 %v122, %v140
    %v159 = vmul.f32 %v121, %v145
    %v160 = vmul.f32 %v122, %v145
    %v161 = vmul.f32 %v121, %v150
    %v162 = vmul.f32 %v122, %v150
    %v163 = vmul.f32 %v121, %v155
    %v164 = vmul.f32 %v122, %v155
    %v165 = vmul.f32 %v123, %v140
    %v166 = vmul.f32 %v124, %v140
    %v167 = vmul.f32 %v123, %v145
    %v168 = vmul.f32 %v124, %v145
    %v169 = vmul.f32 %v123, %v150
    %v170 = vmul.f32 %v124, %v150
    %v171 = vmul.f32 %v123, %v155
    %v172 = vmul.f32 %v124, %v155
    %v173 = vmul.f32 %v125, %v140
    %v174 = vmul.f32 %v126, %v140
    %v175 = vmul.f32 %v125, %v145
    %v176 = vmul.f32 %v126, %v145
    %v177 = vmul.f32 %v125, %v150
    %v178 = vmul.f32 %v126, %v150
    %v179 = vmul.f32 %v125, %v155
    %v180 = vmul.f32 %v126, %v155
    %v181 = vmul.f32 %v127, %v140
    %v182 = vmul.f32 %v128, %v140
    %v183 = vmul.f32 %v127, %v145
    %v184 = vmul.f32 %v128, %v145
    %v185 = vmul.f32 %v127, %v150
    %v186 = vmul.f32 %v128, %v150
    %v187 = vmul.f32 %v127, %v155
    %v188 = vmul.f32 %v128, %v155
    %v189 = vmul.f32 %v129, %v140
    %v190 = vmul.f32 %v130, %v140
    %v191 = vmul.f32 %v129, %v145
    %v192 = vmul.f32 %v130, %v145
    %v193 = vmul.f32 %v129, %v150
    %v194 = vmul.f32 %v130, %v150
    %v195 = vmul.f32 %v129, %v155
    %v196 = vmul.f32 %v130, %v155
    %v197 = vmul.f32 %v131, %v140
    %v198 = vmul.f32 %v132, %v140
    %v199 = vmul.f32 %v131, %v145
    %v200 = vmul.f32 %v132, %v145
    %v201 = vmul.f32 %v131, %v150
    %v202 = vmul.f32 %v132, %v150
    %v203 = vmul.f32 %v131, %v155
    %v204 = vmul.f32 %v132, %v155
    %v205 = vmul.f32 %v133, %v140
    %v206 = vmul.f32 %v134, %v140
    %v207 = vmul.f32 %v133, %v145
    %v208 = vmul.f32 %v134, %v145
    %v209 = vmul.f32 %v133, %v150
    %v210 = vmul.f32 %v134, %v150
    %v211 = vmul.f32 %v133, %v155
    %v212 = vmul.f32 %v134, %v155
    %v213 = vmul.f32 %v135, %v140
    %v214 = vmul.f32 %v136, %v140
    %v215 = vmul.f32 %v135, %v145
    %v216 = vmul.f32 %v136, %v145
    %v217 = vmul.f32 %v135, %v150
    %v218 = vmul.f32 %v136, %v150
    %v219 = vmul.f32 %v135, %v155
    %v220 = vmul.f32 %v136, %v155
    %v221 = vperm.slane %v69, 1
    %v222 = vperm.slane %v69, 5
    %v223 = vperm.slane %v70, 1
    %v224 = vperm.slane %v70, 5
    %v225 = vperm.slane %v71, 1
    %v226 = vperm.slane %v71, 5
    %v227 = vperm.slane %v72, 1
    %v228 = vperm.slane %v72, 5
    %v229 = vperm.slane %v73, 1
    %v230 = vperm.slane %v73, 5
    %v231 = vperm.slane %v74, 1
    %v232 = vperm.slane %v74, 5
    %v233 = vperm.slane %v75, 1
    %v234 = vperm.slane %v75, 5
    %v235 = vperm.slane %v76, 1
    %v236 = vperm.slane %v76, 5
    %v253 = vperm.slane %v221, 1
    %v254 = vperm.slane %v222, 1
    %v255 = vperm.slane %v223, 1
    %v256 = vperm.slane %v224, 1
    %v257 = vperm.slane %v225, 1
    %v258 = vperm.slane %v226, 1
    %v259 = vperm.slane %v227, 1
    %v260 = vperm.slane %v228, 1
    %v261 = vperm.slane %v229, 1
    %v262 = vperm.slane %v230, 1
    %v263 = vperm.slane %v231, 1
    %v264 = vperm.slane %v232, 1
    %v265 = vperm.slane %v233, 1
    %v266 = vperm.slane %v234, 1
    %v267 = vperm.slane %v235, 1
    %v268 = vperm.slane %v236, 1
    %269 = vset.pattern.permute.xlu0 1
    %270 = vperm.xlu0 %269, %v77
    %v271 = vpop.permute.xlu0 %270
    %273 = vset.pattern.permute.xlu0 1
    %274 = vperm.xlu0 %273, %v78
    %v275 = vpop.permute.xlu0 %274
    %277 = vset.pattern.permute.xlu0 1
    %278 = vperm.xlu0 %277, %v79
    %v279 = vpop.permute.xlu0 %278
    %281 = vset.pattern.permute.xlu0 1
    %282 = vperm.xlu0 %281, %v80
    %v283 = vpop.permute.xlu0 %282
    %v285 = vmul.f32 %v253, %v271
    %v286 = vmul.f32 %v254, %v271
    %v287 = vmul.f32 %v253, %v275
    %v288 = vmul.f32 %v254, %v275
    %v289 = vmul.f32 %v253, %v279
    %v290 = vmul.f32 %v254, %v279
    %v291 = vmul.f32 %v253, %v283
    %v292 = vmul.f32 %v254, %v283
    %v293 = vmul.f32 %v255, %v271
    %v294 = vmul.f32 %v256, %v271
    %v295 = vmul.f32 %v255, %v275
    %v296 = vmul.f32 %v256, %v275
    %v297 = vmul.f32 %v255, %v279
    %v298 = vmul.f32 %v256, %v279
    %v299 = vmul.f32 %v255, %v283
    %v300 = vmul.f32 %v256, %v283
    %v301 = vmul.f32 %v257, %v271
    %v302 = vmul.f32 %v258, %v271
    %v303 = vmul.f32 %v257, %v275
    %v304 = vmul.f32 %v258, %v275
    %v305 = vmul.f32 %v257, %v279
    %v306 = vmul.f32 %v258, %v279
    %v307 = vmul.f32 %v257, %v283
    %v308 = vmul.f32 %v258, %v283
    %v309 = vmul.f32 %v259, %v271
    %v310 = vmul.f32 %v260, %v271
    %v311 = vmul.f32 %v259, %v275
    %v312 = vmul.f32 %v260, %v275
    %v313 = vmul.f32 %v259, %v279
    %v314 = vmul.f32 %v260, %v279
    %v315 = vmul.f32 %v259, %v283
    %v316 = vmul.f32 %v260, %v283
    %v317 = vmul.f32 %v261, %v271
    %v318 = vmul.f32 %v262, %v271
    %v319 = vmul.f32 %v261, %v275
    %v320 = vmul.f32 %v262, %v275
    %v321 = vmul.f32 %v261, %v279
    %v322 = vmul.f32 %v262, %v279
    %v323 = vmul.f32 %v261, %v283
    %v324 = vmul.f32 %v262, %v283
    %v325 = vmul.f32 %v263, %v271
    %v326 = vmul.f32 %v264, %v271
    %v327 = vmul.f32 %v263, %v275
    %v328 = vmul.f32 %v264, %v275
    %v329 = vmul.f32 %v263, %v279
    %v330 = vmul.f32 %v264, %v279
    %v331 = vmul.f32 %v263, %v283
    %v332 = vmul.f32 %v264, %v283
    %v333 = vmul.f32 %v265, %v271
    %v334 = vmul.f32 %v266, %v271
    %v335 = vmul.f32 %v265, %v275
    %v336 = vmul.f32 %v266, %v275
    %v337 = vmul.f32 %v265, %v279
    %v338 = vmul.f32 %v266, %v279
    %v339 = vmul.f32 %v265, %v283
    %v340 = vmul.f32 %v266, %v283
    %v341 = vmul.f32 %v267, %v271
    %v342 = vmul.f32 %v268, %v271
    %v343 = vmul.f32 %v267, %v275
    %v344 = vmul.f32 %v268, %v275
    %v345 = vmul.f32 %v267, %v279
    %v346 = vmul.f32 %v268, %v279
    %v347 = vmul.f32 %v267, %v283
    %v348 = vmul.f32 %v268, %v283
    %v349 = vadd.f32 %v157, %v285
    %v350 = vadd.f32 %v158, %v286
    %v351 = vadd.f32 %v159, %v287
    %v352 = vadd.f32 %v160, %v288
    %v353 = vadd.f32 %v161, %v289
    %v354 = vadd.f32 %v162, %v290
    %v355 = vadd.f32 %v163, %v291
    %v356 = vadd.f32 %v164, %v292
    %v357 = vadd.f32 %v165, %v293
    %v358 = vadd.f32 %v166, %v294
    %v359 = vadd.f32 %v167, %v295
    %v360 = vadd.f32 %v168, %v296
    %v361 = vadd.f32 %v169, %v297
    %v362 = vadd.f32 %v170, %v298
    %v363 = vadd.f32 %v171, %v299
    %v364 = vadd.f32 %v172, %v300
    %v365 = vadd.f32 %v173, %v301
    %v366 = vadd.f32 %v174, %v302
    %v367 = vadd.f32 %v175, %v303
    %v368 = vadd.f32 %v176, %v304
    %v369 = vadd.f32 %v177, %v305
    %v370 = vadd.f32 %v178, %v306
    %v371 = vadd.f32 %v179, %v307
    %v372 = vadd.f32 %v180, %v308
    %v373 = vadd.f32 %v181, %v309
    %v374 = vadd.f32 %v182, %v310
    %v375 = vadd.f32 %v183, %v311
    %v376 = vadd.f32 %v184, %v312
    %v377 = vadd.f32 %v185, %v313
    %v378 = vadd.f32 %v186, %v314
    %v379 = vadd.f32 %v187, %v315
    %v380 = vadd.f32 %v188, %v316
    %v381 = vadd.f32 %v189, %v317
    %v382 = vadd.f32 %v190, %v318
    %v383 = vadd.f32 %v191, %v319
    %v384 = vadd.f32 %v192, %v320
    %v385 = vadd.f32 %v193, %v321
    %v386 = vadd.f32 %v194, %v322
    %v387 = vadd.f32 %v195, %v323
    %v388 = vadd.f32 %v196, %v324
    %v389 = vadd.f32 %v197, %v325
    %v390 = vadd.f32 %v198, %v326
    %v391 = vadd.f32 %v199, %v327
    %v392 = vadd.f32 %v200, %v328
    %v393 = vadd.f32 %v201, %v329
    %v394 = vadd.f32 %v202, %v330
    %v395 = vadd.f32 %v203, %v331
    %v396 = vadd.f32 %v204, %v332
    %v397 = vadd.f32 %v205, %v333
    %v398 = vadd.f32 %v206, %v334
    %v399 = vadd.f32 %v207, %v335
    %v400 = vadd.f32 %v208, %v336
    %v401 = vadd.f32 %v209, %v337
    %v402 = vadd.f32 %v210, %v338
    %v403 = vadd.f32 %v211, %v339
    %v404 = vadd.f32 %v212, %v340
    %v405 = vadd.f32 %v213, %v341
    %v406 = vadd.f32 %v214, %v342
    %v407 = vadd.f32 %v215, %v343
    %v408 = vadd.f32 %v216, %v344
    %v409 = vadd.f32 %v217, %v345
    %v410 = vadd.f32 %v218, %v346
    %v411 = vadd.f32 %v219, %v347
    %v412 = vadd.f32 %v220, %v348
    %v413 = vperm.slane %v69, 2
    %v414 = vperm.slane %v69, 6
    %v415 = vperm.slane %v70, 2
    %v416 = vperm.slane %v70, 6
    %v417 = vperm.slane %v71, 2
    %v418 = vperm.slane %v71, 6
    %v419 = vperm.slane %v72, 2
    %v420 = vperm.slane %v72, 6
    %v421 = vperm.slane %v73, 2
    %v422 = vperm.slane %v73, 6
    %v423 = vperm.slane %v74, 2
    %v424 = vperm.slane %v74, 6
    %v425 = vperm.slane %v75, 2
    %v426 = vperm.slane %v75, 6
    %v427 = vperm.slane %v76, 2
    %v428 = vperm.slane %v76, 6
    %v445 = vperm.slane %v413, 2
    %v446 = vperm.slane %v414, 2
    %v447 = vperm.slane %v415, 2
    %v448 = vperm.slane %v416, 2
    %v449 = vperm.slane %v417, 2
    %v450 = vperm.slane %v418, 2
    %v451 = vperm.slane %v419, 2
    %v452 = vperm.slane %v420, 2
    %v453 = vperm.slane %v421, 2
    %v454 = vperm.slane %v422, 2
    %v455 = vperm.slane %v423, 2
    %v456 = vperm.slane %v424, 2
    %v457 = vperm.slane %v425, 2
    %v458 = vperm.slane %v426, 2
    %v459 = vperm.slane %v427, 2
    %v460 = vperm.slane %v428, 2
    %461 = vset.pattern.permute.xlu0 2
    %462 = vperm.xlu0 %461, %v77
    %v463 = vpop.permute.xlu0 %462
    %465 = vset.pattern.permute.xlu0 2
    %466 = vperm.xlu0 %465, %v78
    %v467 = vpop.permute.xlu0 %466
    %469 = vset.pattern.permute.xlu0 2
    %470 = vperm.xlu0 %469, %v79
    %v471 = vpop.permute.xlu0 %470
    %473 = vset.pattern.permute.xlu0 2
    %474 = vperm.xlu0 %473, %v80
    %v475 = vpop.permute.xlu0 %474
    %v477 = vmul.f32 %v445, %v463
    %v478 = vmul.f32 %v446, %v463
    %v479 = vmul.f32 %v445, %v467
    %v480 = vmul.f32 %v446, %v467
    %v481 = vmul.f32 %v445, %v471
    %v482 = vmul.f32 %v446, %v471
    %v483 = vmul.f32 %v445, %v475
    %v484 = vmul.f32 %v446, %v475
    %v485 = vmul.f32 %v447, %v463
    %v486 = vmul.f32 %v448, %v463
    %v487 = vmul.f32 %v447, %v467
    %v488 = vmul.f32 %v448, %v467
    %v489 = vmul.f32 %v447, %v471
    %v490 = vmul.f32 %v448, %v471
    %v491 = vmul.f32 %v447, %v475
    %v492 = vmul.f32 %v448, %v475
    %v493 = vmul.f32 %v449, %v463
    %v494 = vmul.f32 %v450, %v463
    %v495 = vmul.f32 %v449, %v467
    %v496 = vmul.f32 %v450, %v467
    %v497 = vmul.f32 %v449, %v471
    %v498 = vmul.f32 %v450, %v471
    %v499 = vmul.f32 %v449, %v475
    %v500 = vmul.f32 %v450, %v475
    %v501 = vmul.f32 %v451, %v463
    %v502 = vmul.f32 %v452, %v463
    %v503 = vmul.f32 %v451, %v467
    %v504 = vmul.f32 %v452, %v467
    %v505 = vmul.f32 %v451, %v471
    %v506 = vmul.f32 %v452, %v471
    %v507 = vmul.f32 %v451, %v475
    %v508 = vmul.f32 %v452, %v475
    %v509 = vmul.f32 %v453, %v463
    %v510 = vmul.f32 %v454, %v463
    %v511 = vmul.f32 %v453, %v467
    %v512 = vmul.f32 %v454, %v467
    %v513 = vmul.f32 %v453, %v471
    %v514 = vmul.f32 %v454, %v471
    %v515 = vmul.f32 %v453, %v475
    %v516 = vmul.f32 %v454, %v475
    %v517 = vmul.f32 %v455, %v463
    %v518 = vmul.f32 %v456, %v463
    %v519 = vmul.f32 %v455, %v467
    %v520 = vmul.f32 %v456, %v467
    %v521 = vmul.f32 %v455, %v471
    %v522 = vmul.f32 %v456, %v471
    %v523 = vmul.f32 %v455, %v475
    %v524 = vmul.f32 %v456, %v475
    %v525 = vmul.f32 %v457, %v463
    %v526 = vmul.f32 %v458, %v463
    %v527 = vmul.f32 %v457, %v467
    %v528 = vmul.f32 %v458, %v467
    %v529 = vmul.f32 %v457, %v471
    %v530 = vmul.f32 %v458, %v471
    %v531 = vmul.f32 %v457, %v475
    %v532 = vmul.f32 %v458, %v475
    %v533 = vmul.f32 %v459, %v463
    %v534 = vmul.f32 %v460, %v463
    %v535 = vmul.f32 %v459, %v467
    %v536 = vmul.f32 %v460, %v467
    %v537 = vmul.f32 %v459, %v471
    %v538 = vmul.f32 %v460, %v471
    %v539 = vmul.f32 %v459, %v475
    %v540 = vmul.f32 %v460, %v475
    %v541 = vadd.f32 %v349, %v477
    %v542 = vadd.f32 %v350, %v478
    %v543 = vadd.f32 %v351, %v479
    %v544 = vadd.f32 %v352, %v480
    %v545 = vadd.f32 %v353, %v481
    %v546 = vadd.f32 %v354, %v482
    %v547 = vadd.f32 %v355, %v483
    %v548 = vadd.f32 %v356, %v484
    %v549 = vadd.f32 %v357, %v485
    %v550 = vadd.f32 %v358, %v486
    %v551 = vadd.f32 %v359, %v487
    %v552 = vadd.f32 %v360, %v488
    %v553 = vadd.f32 %v361, %v489
    %v554 = vadd.f32 %v362, %v490
    %v555 = vadd.f32 %v363, %v491
    %v556 = vadd.f32 %v364, %v492
    %v557 = vadd.f32 %v365, %v493
    %v558 = vadd.f32 %v366, %v494
    %v559 = vadd.f32 %v367, %v495
    %v560 = vadd.f32 %v368, %v496
    %v561 = vadd.f32 %v369, %v497
    %v562 = vadd.f32 %v370, %v498
    %v563 = vadd.f32 %v371, %v499
    %v564 = vadd.f32 %v372, %v500
    %v565 = vadd.f32 %v373, %v501
    %v566 = vadd.f32 %v374, %v502
    %v567 = vadd.f32 %v375, %v503
    %v568 = vadd.f32 %v376, %v504
    %v569 = vadd.f32 %v377, %v505
    %v570 = vadd.f32 %v378, %v506
    %v571 = vadd.f32 %v379, %v507
    %v572 = vadd.f32 %v380, %v508
    %v573 = vadd.f32 %v381, %v509
    %v574 = vadd.f32 %v382, %v510
    %v575 = vadd.f32 %v383, %v511
    %v576 = vadd.f32 %v384, %v512
    %v577 = vadd.f32 %v385, %v513
    %v578 = vadd.f32 %v386, %v514
    %v579 = vadd.f32 %v387, %v515
    %v580 = vadd.f32 %v388, %v516
    %v581 = vadd.f32 %v389, %v517
    %v582 = vadd.f32 %v390, %v518
    %v583 = vadd.f32 %v391, %v519
    %v584 = vadd.f32 %v392, %v520
    %v585 = vadd.f32 %v393, %v521
    %v586 = vadd.f32 %v394, %v522
    %v587 = vadd.f32 %v395, %v523
    %v588 = vadd.f32 %v396, %v524
    %v589 = vadd.f32 %v397, %v525
    %v590 = vadd.f32 %v398, %v526
    %v591 = vadd.f32 %v399, %v527
    %v592 = vadd.f32 %v400, %v528
    %v593 = vadd.f32 %v401, %v529
    %v594 = vadd.f32 %v402, %v530
    %v595 = vadd.f32 %v403, %v531
    %v596 = vadd.f32 %v404, %v532
    %v597 = vadd.f32 %v405, %v533
    %v598 = vadd.f32 %v406, %v534
    %v599 = vadd.f32 %v407, %v535
    %v600 = vadd.f32 %v408, %v536
    %v601 = vadd.f32 %v409, %v537
    %v602 = vadd.f32 %v410, %v538
    %v603 = vadd.f32 %v411, %v539
    %v604 = vadd.f32 %v412, %v540
    %v605 = vperm.slane %v69, 3
    %v606 = vperm.slane %v69, 7
    %v607 = vperm.slane %v70, 3
    %v608 = vperm.slane %v70, 7
    %v609 = vperm.slane %v71, 3
    %v610 = vperm.slane %v71, 7
    %v611 = vperm.slane %v72, 3
    %v612 = vperm.slane %v72, 7
    %v613 = vperm.slane %v73, 3
    %v614 = vperm.slane %v73, 7
    %v615 = vperm.slane %v74, 3
    %v616 = vperm.slane %v74, 7
    %v617 = vperm.slane %v75, 3
    %v618 = vperm.slane %v75, 7
    %v619 = vperm.slane %v76, 3
    %v620 = vperm.slane %v76, 7
    %v637 = vperm.slane %v605, 3
    %v638 = vperm.slane %v606, 3
    %v639 = vperm.slane %v607, 3
    %v640 = vperm.slane %v608, 3
    %v641 = vperm.slane %v609, 3
    %v642 = vperm.slane %v610, 3
    %v643 = vperm.slane %v611, 3
    %v644 = vperm.slane %v612, 3
    %v645 = vperm.slane %v613, 3
    %v646 = vperm.slane %v614, 3
    %v647 = vperm.slane %v615, 3
    %v648 = vperm.slane %v616, 3
    %v649 = vperm.slane %v617, 3
    %v650 = vperm.slane %v618, 3
    %v651 = vperm.slane %v619, 3
    %v652 = vperm.slane %v620, 3
    %653 = vset.pattern.permute.xlu0 3
    %654 = vperm.xlu0 %653, %v77
    %v655 = vpop.permute.xlu0 %654
    %657 = vset.pattern.permute.xlu0 3
    %658 = vperm.xlu0 %657, %v78
    %v659 = vpop.permute.xlu0 %658
    %661 = vset.pattern.permute.xlu0 3
    %662 = vperm.xlu0 %661, %v79
    %v663 = vpop.permute.xlu0 %662
    %665 = vset.pattern.permute.xlu0 3
    %666 = vperm.xlu0 %665, %v80
    %v667 = vpop.permute.xlu0 %666
    %v669 = vmul.f32 %v637, %v655
    %v670 = vmul.f32 %v638, %v655
    %v671 = vmul.f32 %v637, %v659
    %v672 = vmul.f32 %v638, %v659
    %v673 = vmul.f32 %v637, %v663
    %v674 = vmul.f32 %v638, %v663
    %v675 = vmul.f32 %v637, %v667
    %v676 = vmul.f32 %v638, %v667
    %v677 = vmul.f32 %v639, %v655
    %v678 = vmul.f32 %v640, %v655
    %v679 = vmul.f32 %v639, %v659
    %v680 = vmul.f32 %v640, %v659
    %v681 = vmul.f32 %v639, %v663
    %v682 = vmul.f32 %v640, %v663
    %v683 = vmul.f32 %v639, %v667
    %v684 = vmul.f32 %v640, %v667
    %v685 = vmul.f32 %v641, %v655
    %v686 = vmul.f32 %v642, %v655
    %v687 = vmul.f32 %v641, %v659
    %v688 = vmul.f32 %v642, %v659
    %v689 = vmul.f32 %v641, %v663
    %v690 = vmul.f32 %v642, %v663
    %v691 = vmul.f32 %v641, %v667
    %v692 = vmul.f32 %v642, %v667
    %v693 = vmul.f32 %v643, %v655
    %v694 = vmul.f32 %v644, %v655
    %v695 = vmul.f32 %v643, %v659
    %v696 = vmul.f32 %v644, %v659
    %v697 = vmul.f32 %v643, %v663
    %v698 = vmul.f32 %v644, %v663
    %v699 = vmul.f32 %v643, %v667
    %v700 = vmul.f32 %v644, %v667
    %v701 = vmul.f32 %v645, %v655
    %v702 = vmul.f32 %v646, %v655
    %v703 = vmul.f32 %v645, %v659
    %v704 = vmul.f32 %v646, %v659
    %v705 = vmul.f32 %v645, %v663
    %v706 = vmul.f32 %v646, %v663
    %v707 = vmul.f32 %v645, %v667
    %v708 = vmul.f32 %v646, %v667
    %v709 = vmul.f32 %v647, %v655
    %v710 = vmul.f32 %v648, %v655
    %v711 = vmul.f32 %v647, %v659
    %v712 = vmul.f32 %v648, %v659
    %v713 = vmul.f32 %v647, %v663
    %v714 = vmul.f32 %v648, %v663
    %v715 = vmul.f32 %v647, %v667
    %v716 = vmul.f32 %v648, %v667
    %v717 = vmul.f32 %v649, %v655
    %v718 = vmul.f32 %v650, %v655
    %v719 = vmul.f32 %v649, %v659
    %v720 = vmul.f32 %v650, %v659
    %v721 = vmul.f32 %v649, %v663
    %v722 = vmul.f32 %v650, %v663
    %v723 = vmul.f32 %v649, %v667
    %v724 = vmul.f32 %v650, %v667
    %v725 = vmul.f32 %v651, %v655
    %v726 = vmul.f32 %v652, %v655
    %v727 = vmul.f32 %v651, %v659
    %v728 = vmul.f32 %v652, %v659
    %v729 = vmul.f32 %v651, %v663
    %v730 = vmul.f32 %v652, %v663
    %v731 = vmul.f32 %v651, %v667
    %v732 = vmul.f32 %v652, %v667
    %v733 = vadd.f32 %v541, %v669
    %v734 = vadd.f32 %v542, %v670
    %v735 = vadd.f32 %v543, %v671
    %v736 = vadd.f32 %v544, %v672
    %v737 = vadd.f32 %v545, %v673
    %v738 = vadd.f32 %v546, %v674
    %v739 = vadd.f32 %v547, %v675
    %v740 = vadd.f32 %v548, %v676
    %v741 = vadd.f32 %v549, %v677
    %v742 = vadd.f32 %v550, %v678
    %v743 = vadd.f32 %v551, %v679
    %v744 = vadd.f32 %v552, %v680
    %v745 = vadd.f32 %v553, %v681
    %v746 = vadd.f32 %v554, %v682
    %v747 = vadd.f32 %v555, %v683
    %v748 = vadd.f32 %v556, %v684
    %v749 = vadd.f32 %v557, %v685
    %v750 = vadd.f32 %v558, %v686
    %v751 = vadd.f32 %v559, %v687
    %v752 = vadd.f32 %v560, %v688
    %v753 = vadd.f32 %v561, %v689
    %v754 = vadd.f32 %v562, %v690
    %v755 = vadd.f32 %v563, %v691
    %v756 = vadd.f32 %v564, %v692
    %v757 = vadd.f32 %v565, %v693
    %v758 = vadd.f32 %v566, %v694
    %v759 = vadd.f32 %v567, %v695
    %v760 = vadd.f32 %v568, %v696
    %v761 = vadd.f32 %v569, %v697
    %v762 = vadd.f32 %v570, %v698
    %v763 = vadd.f32 %v571, %v699
    %v764 = vadd.f32 %v572, %v700
    %v765 = vadd.f32 %v573, %v701
    %v766 = vadd.f32 %v574, %v702
    %v767 = vadd.f32 %v575, %v703
    %v768 = vadd.f32 %v576, %v704
    %v769 = vadd.f32 %v577, %v705
    %v770 = vadd.f32 %v578, %v706
    %v771 = vadd.f32 %v579, %v707
    %v772 = vadd.f32 %v580, %v708
    %v773 = vadd.f32 %v581, %v709
    %v774 = vadd.f32 %v582, %v710
    %v775 = vadd.f32 %v583, %v711
    %v776 = vadd.f32 %v584, %v712
    %v777 = vadd.f32 %v585, %v713
    %v778 = vadd.f32 %v586, %v714
    %v779 = vadd.f32 %v587, %v715
    %v780 = vadd.f32 %v588, %v716
    %v781 = vadd.f32 %v589, %v717
    %v782 = vadd.f32 %v590, %v718
    %v783 = vadd.f32 %v591, %v719
    %v784 = vadd.f32 %v592, %v720
    %v785 = vadd.f32 %v593, %v721
    %v786 = vadd.f32 %v594, %v722
    %v787 = vadd.f32 %v595, %v723
    %v788 = vadd.f32 %v596, %v724
    %v789 = vadd.f32 %v597, %v725
    %v790 = vadd.f32 %v598, %v726
    %v791 = vadd.f32 %v599, %v727
    %v792 = vadd.f32 %v600, %v728
    %v793 = vadd.f32 %v601, %v729
    %v794 = vadd.f32 %v602, %v730
    %v795 = vadd.f32 %v603, %v731
    %v796 = vadd.f32 %v604, %v732
    %v797 = vmax.f32 %v733, 0.0
    %v798 = vmax.f32 %v734, 0.0
    %v799 = vmax.f32 %v735, 0.0
    %v800 = vmax.f32 %v736, 0.0
    %v801 = vmax.f32 %v737, 0.0
    %v802 = vmax.f32 %v738, 0.0
    %v803 = vmax.f32 %v739, 0.0
    %v804 = vmax.f32 %v740, 0.0
    %v805 = vmax.f32 %v741, 0.0
    %v806 = vmax.f32 %v742, 0.0
    %v807 = vmax.f32 %v743, 0.0
    %v808 = vmax.f32 %v744, 0.0
    %v809 = vmax.f32 %v745, 0.0
    %v810 = vmax.f32 %v746, 0.0
    %v811 = vmax.f32 %v747, 0.0
    %v812 = vmax.f32 %v748, 0.0
    %v813 = vmax.f32 %v749, 0.0
    %v814 = vmax.f32 %v750, 0.0
    %v815 = vmax.f32 %v751, 0.0
    %v816 = vmax.f32 %v752, 0.0
    %v817 = vmax.f32 %v753, 0.0
    %v818 = vmax.f32 %v754, 0.0
    %v819 = vmax.f32 %v755, 0.0
    %v820 = vmax.f32 %v756, 0.0
    %v821 = vmax.f32 %v757, 0.0
    %v822 = vmax.f32 %v758, 0.0
    %v823 = vmax.f32 %v759, 0.0
    %v824 = vmax.f32 %v760, 0.0
    %v825 = vmax.f32 %v761, 0.0
    %v826 = vmax.f32 %v762, 0.0
    %v827 = vmax.f32 %v763, 0.0
    %v828 = vmax.f32 %v764, 0.0
    %v829 = vmax.f32 %v765, 0.0
    %v830 = vmax.f32 %v766, 0.0
    %v831 = vmax.f32 %v767, 0.0
    %v832 = vmax.f32 %v768, 0.0
    %v833 = vmax.f32 %v769, 0.0
    %v834 = vmax.f32 %v770, 0.0
    %v835 = vmax.f32 %v771, 0.0
    %v836 = vmax.f32 %v772, 0.0
    %v837 = vmax.f32 %v773, 0.0
    %v838 = vmax.f32 %v774, 0.0
    %v839 = vmax.f32 %v775, 0.0
    %v840 = vmax.f32 %v776, 0.0
    %v841 = vmax.f32 %v777, 0.0
    %v842 = vmax.f32 %v778, 0.0
    %v843 = vmax.f32 %v779, 0.0
    %v844 = vmax.f32 %v780, 0.0
    %v845 = vmax.f32 %v781, 0.0
    %v846 = vmax.f32 %v782, 0.0
    %v847 = vmax.f32 %v783, 0.0
    %v848 = vmax.f32 %v784, 0.0
    %v849 = vmax.f32 %v785, 0.0
    %v850 = vmax.f32 %v786, 0.0
    %v851 = vmax.f32 %v787, 0.0
    %v852 = vmax.f32 %v788, 0.0
    %v853 = vmax.f32 %v789, 0.0
    %v854 = vmax.f32 %v790, 0.0
    %v855 = vmax.f32 %v791, 0.0
    %v856 = vmax.f32 %v792, 0.0
    %v857 = vmax.f32 %v793, 0.0
    %v858 = vmax.f32 %v794, 0.0
    %v859 = vmax.f32 %v795, 0.0
    %v860 = vmax.f32 %v796, 0.0
    %v861 = vadd.f32 %v797, %v798
    %862 = vadd.xlane.f32.xlu0 %v861
    %v863 = vpop.xlane.xlu0 %862
    %v864 = vadd.f32 %v799, %v800
    %865 = vadd.xlane.f32.xlu0 %v864
    %v866 = vpop.xlane.xlu0 %865
    %v867 = vadd.f32 %v801, %v802
    %868 = vadd.xlane.f32.xlu0 %v867
    %v869 = vpop.xlane.xlu0 %868
    %v870 = vadd.f32 %v803, %v804
    %871 = vadd.xlane.f32.xlu0 %v870
    %v872 = vpop.xlane.xlu0 %871
    %v873 = vadd.f32 %v805, %v806
    %874 = vadd.xlane.f32.xlu0 %v873
    %v875 = vpop.xlane.xlu0 %874
    %v876 = vadd.f32 %v807, %v808
    %877 = vadd.xlane.f32.xlu0 %v876
    %v878 = vpop.xlane.xlu0 %877
    %v879 = vadd.f32 %v809, %v810
    %880 = vadd.xlane.f32.xlu0 %v879
    %v881 = vpop.xlane.xlu0 %880
    %v882 = vadd.f32 %v811, %v812
    %883 = vadd.xlane.f32.xlu0 %v882
    %v884 = vpop.xlane.xlu0 %883
    %v885 = vadd.f32 %v813, %v814
    %886 = vadd.xlane.f32.xlu0 %v885
    %v887 = vpop.xlane.xlu0 %886
    %v888 = vadd.f32 %v815, %v816
    %889 = vadd.xlane.f32.xlu0 %v888
    %v890 = vpop.xlane.xlu0 %889
    %v891 = vadd.f32 %v817, %v818
    %892 = vadd.xlane.f32.xlu0 %v891
    %v893 = vpop.xlane.xlu0 %892
    %v894 = vadd.f32 %v819, %v820
    %895 = vadd.xlane.f32.xlu0 %v894
    %v896 = vpop.xlane.xlu0 %895
    %v897 = vadd.f32 %v821, %v822
    %898 = vadd.xlane.f32.xlu0 %v897
    %v899 = vpop.xlane.xlu0 %898
    %v900 = vadd.f32 %v823, %v824
    %901 = vadd.xlane.f32.xlu0 %v900
    %v902 = vpop.xlane.xlu0 %901
    %v903 = vadd.f32 %v825, %v826
    %904 = vadd.xlane.f32.xlu0 %v903
    %v905 = vpop.xlane.xlu0 %904
    %v906 = vadd.f32 %v827, %v828
    %907 = vadd.xlane.f32.xlu0 %v906
    %v908 = vpop.xlane.xlu0 %907
    %v909 = vadd.f32 %v829, %v830
    %910 = vadd.xlane.f32.xlu0 %v909
    %v911 = vpop.xlane.xlu0 %910
    %v912 = vadd.f32 %v831, %v832
    %913 = vadd.xlane.f32.xlu0 %v912
    %v914 = vpop.xlane.xlu0 %913
    %v915 = vadd.f32 %v833, %v834
    %916 = vadd.xlane.f32.xlu0 %v915
    %v917 = vpop.xlane.xlu0 %916
    %v918 = vadd.f32 %v835, %v836
    %919 = vadd.xlane.f32.xlu0 %v918
    %v920 = vpop.xlane.xlu0 %919
    %v921 = vadd.f32 %v837, %v838
    %922 = vadd.xlane.f32.xlu0 %v921
    %v923 = vpop.xlane.xlu0 %922
    %v924 = vadd.f32 %v839, %v840
    %925 = vadd.xlane.f32.xlu0 %v924
    %v926 = vpop.xlane.xlu0 %925
    %v927 = vadd.f32 %v841, %v842
    %928 = vadd.xlane.f32.xlu0 %v927
    %v929 = vpop.xlane.xlu0 %928
    %v930 = vadd.f32 %v843, %v844
    %931 = vadd.xlane.f32.xlu0 %v930
    %v932 = vpop.xlane.xlu0 %931
    %v933 = vadd.f32 %v845, %v846
    %934 = vadd.xlane.f32.xlu0 %v933
    %v935 = vpop.xlane.xlu0 %934
    %v936 = vadd.f32 %v847, %v848
    %937 = vadd.xlane.f32.xlu0 %v936
    %v938 = vpop.xlane.xlu0 %937
    %v939 = vadd.f32 %v849, %v850
    %940 = vadd.xlane.f32.xlu0 %v939
    %v941 = vpop.xlane.xlu0 %940
    %v942 = vadd.f32 %v851, %v852
    %943 = vadd.xlane.f32.xlu0 %v942
    %v944 = vpop.xlane.xlu0 %943
    %v945 = vadd.f32 %v853, %v854
    %946 = vadd.xlane.f32.xlu0 %v945
    %v947 = vpop.xlane.xlu0 %946
    %v948 = vadd.f32 %v855, %v856
    %949 = vadd.xlane.f32.xlu0 %v948
    %v950 = vpop.xlane.xlu0 %949
    %v951 = vadd.f32 %v857, %v858
    %952 = vadd.xlane.f32.xlu0 %v951
    %v953 = vpop.xlane.xlu0 %952
    %v954 = vadd.f32 %v859, %v860
    %955 = vadd.xlane.f32.xlu0 %v954
    %v956 = vpop.xlane.xlu0 %955
    %v957 = vmul.f32 %v863, 0.00390625
    %v958 = vmul.f32 %v866, 0.00390625
    %v959 = vmul.f32 %v869, 0.00390625
    %v960 = vmul.f32 %v872, 0.00390625
    %v961 = vmul.f32 %v875, 0.00390625
    %v962 = vmul.f32 %v878, 0.00390625
    %v963 = vmul.f32 %v881, 0.00390625
    %v964 = vmul.f32 %v884, 0.00390625
    %v965 = vmul.f32 %v887, 0.00390625
    %v966 = vmul.f32 %v890, 0.00390625
    %v967 = vmul.f32 %v893, 0.00390625
    %v968 = vmul.f32 %v896, 0.00390625
    %v969 = vmul.f32 %v899, 0.00390625
    %v970 = vmul.f32 %v902, 0.00390625
    %v971 = vmul.f32 %v905, 0.00390625
    %v972 = vmul.f32 %v908, 0.00390625
    %v973 = vmul.f32 %v911, 0.00390625
    %v974 = vmul.f32 %v914, 0.00390625
    %v975 = vmul.f32 %v917, 0.00390625
    %v976 = vmul.f32 %v920, 0.00390625
    %v977 = vmul.f32 %v923, 0.00390625
    %v978 = vmul.f32 %v926, 0.00390625
    %v979 = vmul.f32 %v929, 0.00390625
    %v980 = vmul.f32 %v932, 0.00390625
    %v981 = vmul.f32 %v935, 0.00390625
    %v982 = vmul.f32 %v938, 0.00390625
    %v983 = vmul.f32 %v941, 0.00390625
    %v984 = vmul.f32 %v944, 0.00390625
    %v985 = vmul.f32 %v947, 0.00390625
    %v986 = vmul.f32 %v950, 0.00390625
    %v987 = vmul.f32 %v953, 0.00390625
    %v988 = vmul.f32 %v956, 0.00390625
    %v989 = vld [vmem:[#allocation5] sm:$0xff]
    %v990 = vld [vmem:[#allocation5 + $0x8] sm:$0xff]
    %v991 = vld [vmem:[#allocation5 + $0x10] sm:$0xff]
    %v992 = vld [vmem:[#allocation5 + $0x18] sm:$0xff]
    %v993 = vld [vmem:[#allocation5 + $0x20] sm:$0xff]
    %v994 = vld [vmem:[#allocation5 + $0x28] sm:$0xff]
    %v995 = vld [vmem:[#allocation5 + $0x30] sm:$0xff]
    %v996 = vld [vmem:[#allocation5 + $0x38] sm:$0xff]
    %v997 = vld [vmem:[%s3] sm:$0xff]
    %v998 = vperm.slane %v997, 0
    %v999 = vlaneseq
    %v1000 = vshrl.u32 %v999, 7
    %1002 = vset.pattern.permute.xlu0 %v1000
    %1003 = vperm.xlu0 %1002, %v998
    %v1004 = vpop.permute.xlu0 %1003
    %v1005 = vperm.slane %v997, 1
    %v1006 = vlaneseq
    %v1007 = vshrl.u32 %v1006, 7
    %1009 = vset.pattern.permute.xlu0 %v1007
    %1010 = vperm.xlu0 %1009, %v1005
    %v1011 = vpop.permute.xlu0 %1010
    %v1012 = vperm.slane %v997, 2
    %v1013 = vlaneseq
    %v1014 = vshrl.u32 %v1013, 7
    %1016 = vset.pattern.permute.xlu0 %v1014
    %1017 = vperm.xlu0 %1016, %v1012
    %v1018 = vpop.permute.xlu0 %1017
    %v1019 = vperm.slane %v997, 3
    %v1020 = vlaneseq
    %v1021 = vshrl.u32 %v1020, 7
    %1023 = vset.pattern.permute.xlu0 %v1021
    %1024 = vperm.xlu0 %1023, %v1019
    %v1025 = vpop.permute.xlu0 %1024
    %v1026 = vperm.slane %v997, 4
    %v1027 = vlaneseq
    %v1028 = vshrl.u32 %v1027, 7
    %1030 = vset.pattern.permute.xlu0 %v1028
    %1031 = vperm.xlu0 %1030, %v1026
    %v1032 = vpop.permute.xlu0 %1031
    %v1033 = vperm.slane %v997, 5
    %v1034 = vlaneseq
    %v1035 = vshrl.u32 %v1034, 7
    %1037 = vset.pattern.permute.xlu0 %v1035
    %1038 = vperm.xlu0 %1037, %v1033
    %v1039 = vpop.permute.xlu0 %1038
    %v1040 = vperm.slane %v997, 6
    %v1041 = vlaneseq
    %v1042 = vshrl.u32 %v1041, 7
    %1044 = vset.pattern.permute.xlu0 %v1042
    %1045 = vperm.xlu0 %1044, %v1040
    %v1046 = vpop.permute.xlu0 %1045
    %v1047 = vperm.slane %v997, 7
    %v1048 = vlaneseq
    %v1049 = vshrl.u32 %v1048, 7
    %1051 = vset.pattern.permute.xlu0 %v1049
    %1052 = vperm.xlu0 %1051, %v1047
    %v1053 = vpop.permute.xlu0 %1052
    %v1054 = vmul.f32 %v989, %v1004
    %v1055 = vmul.f32 %v990, %v1011
    %v1056 = vmul.f32 %v991, %v1018
    %v1057 = vmul.f32 %v992, %v1025
    %v1058 = vmul.f32 %v993, %v1032
    %v1059 = vmul.f32 %v994, %v1039
    %v1060 = vmul.f32 %v995, %v1046
    %v1061 = vmul.f32 %v996, %v1053
    %vm1062 = vcmask 261120
    %v1063 = vsel %vm1062, %v1054, 0.0
    %v1064 = vrot.slane %v1063, 4
    %v1065 = vadd.f32 %v1063, %v1064
    %v1066 = vrot.slane %v1065, 2
    %v1067 = vadd.f32 %v1065, %v1066
    %v1068 = vrot.slane %v1067, 1
    %v1069 = vadd.f32 %v1067, %v1068
    %v1070 = vsel %vm1062, %v1055, 0.0
    %v1071 = vrot.slane %v1070, 4
    %v1072 = vadd.f32 %v1070, %v1071
    %v1073 = vrot.slane %v1072, 2
    %v1074 = vadd.f32 %v1072, %v1073
    %v1075 = vrot.slane %v1074, 1
    %v1076 = vadd.f32 %v1074, %v1075
    %v1077 = vsel %vm1062, %v1056, 0.0
    %v1078 = vrot.slane %v1077, 4
    %v1079 = vadd.f32 %v1077, %v1078
    %v1080 = vrot.slane %v1079, 2
    %v1081 = vadd.f32 %v1079, %v1080
    %v1082 = vrot.slane %v1081, 1
    %v1083 = vadd.f32 %v1081, %v1082
    %v1084 = vsel %vm1062, %v1057, 0.0
    %v1085 = vrot.slane %v1084, 4
    %v1086 = vadd.f32 %v1084, %v1085
    %v1087 = vrot.slane %v1086, 2
    %v1088 = vadd.f32 %v1086, %v1087
    %v1089 = vrot.slane %v1088, 1
    %v1090 = vadd.f32 %v1088, %v1089
    %v1091 = vsel %vm1062, %v1058, 0.0
    %v1092 = vrot.slane %v1091, 4
    %v1093 = vadd.f32 %v1091, %v1092
    %v1094 = vrot.slane %v1093, 2
    %v1095 = vadd.f32 %v1093, %v1094
    %v1096 = vrot.slane %v1095, 1
    %v1097 = vadd.f32 %v1095, %v1096
    %v1098 = vsel %vm1062, %v1059, 0.0
    %v1099 = vrot.slane %v1098, 4
    %v1100 = vadd.f32 %v1098, %v1099
    %v1101 = vrot.slane %v1100, 2
    %v1102 = vadd.f32 %v1100, %v1101
    %v1103 = vrot.slane %v1102, 1
    %v1104 = vadd.f32 %v1102, %v1103
    %v1105 = vsel %vm1062, %v1060, 0.0
    %v1106 = vrot.slane %v1105, 4
    %v1107 = vadd.f32 %v1105, %v1106
    %v1108 = vrot.slane %v1107, 2
    %v1109 = vadd.f32 %v1107, %v1108
    %v1110 = vrot.slane %v1109, 1
    %v1111 = vadd.f32 %v1109, %v1110
    %v1112 = vsel %vm1062, %v1061, 0.0
    %v1113 = vrot.slane %v1112, 4
    %v1114 = vadd.f32 %v1112, %v1113
    %v1115 = vrot.slane %v1114, 2
    %v1116 = vadd.f32 %v1114, %v1115
    %v1117 = vrot.slane %v1116, 1
    %v1118 = vadd.f32 %v1116, %v1117
    %vm1119 = vcmask 64512
    %v1120 = vsel %vm1119, %v997, 0.0
    %1121 = vadd.xlane.f32.xlu0 %v1120
    %v1122 = vpop.xlane.xlu0 %1121
    %v1123 = vadd.f32 %v1122, 1e-06
    %v1125 = vrot.slane %v1123, 1
    %v1126 = vrot.slane %v1123, 2
    %v1127 = vrot.slane %v1123, 3
    %v1128 = vrot.slane %v1123, 4
    %v1129 = vrot.slane %v1123, 5
    %v1130 = vrot.slane %v1123, 6
    %v1131 = vrot.slane %v1123, 7
    %v1140 = vrcp.pop %v1123
    %v1141 = vmul.f32 %v1123, %v1140
    %v1142 = vsub.f32 1.0, %v1141
    %v1143 = vmul.f32 %v1140, %v1142
    %v1144 = vadd.f32 %v1140, %v1143
    %vm1145 = vweird.f32 %v1123
    %vm1146 = vweird.f32 %v1140
    %vm1147 = vmor %vm1145, %vm1146
    %v1148 = vsel %vm1147, %v1140, %v1144
    %v1149 = vand.u32 2147483647, %v1123
    %vm1150 = vcmp.eq.f32.partialorder %v1149, 8.507059e+37
    %v1151 = vand.u32 %v1123, 2147483648
    %v1152 = vor.u32 1.1754944e-38, %v1151
    %v1153 = vsel %vm1150, %v1152, %v1148
    %v1154 = vmul.f32 %v1069, %v1153
    %v1155 = vrcp.pop %v1125
    %v1156 = vmul.f32 %v1125, %v1155
    %v1157 = vsub.f32 1.0, %v1156
    %v1158 = vmul.f32 %v1155, %v1157
    %v1159 = vadd.f32 %v1155, %v1158
    %vm1160 = vweird.f32 %v1125
    %vm1161 = vweird.f32 %v1155
    %vm1162 = vmor %vm1160, %vm1161
    %v1163 = vsel %vm1162, %v1155, %v1159
    %v1164 = vand.u32 2147483647, %v1125
    %vm1165 = vcmp.eq.f32.partialorder %v1164, 8.507059e+37
    %v1166 = vand.u32 %v1125, 2147483648
    %v1167 = vor.u32 1.1754944e-38, %v1166
    %v1168 = vsel %vm1165, %v1167, %v1163
    %v1169 = vmul.f32 %v1076, %v1168
    %v1170 = vrcp.pop %v1126
    %v1171 = vmul.f32 %v1126, %v1170
    %v1172 = vsub.f32 1.0, %v1171
    %v1173 = vmul.f32 %v1170, %v1172
    %v1174 = vadd.f32 %v1170, %v1173
    %vm1175 = vweird.f32 %v1126
    %vm1176 = vweird.f32 %v1170
    %vm1177 = vmor %vm1175, %vm1176
    %v1178 = vsel %vm1177, %v1170, %v1174
    %v1179 = vand.u32 2147483647, %v1126
    %vm1180 = vcmp.eq.f32.partialorder %v1179, 8.507059e+37
    %v1181 = vand.u32 %v1126, 2147483648
    %v1182 = vor.u32 1.1754944e-38, %v1181
    %v1183 = vsel %vm1180, %v1182, %v1178
    %v1184 = vmul.f32 %v1083, %v1183
    %v1185 = vrcp.pop %v1127
    %v1186 = vmul.f32 %v1127, %v1185
    %v1187 = vsub.f32 1.0, %v1186
    %v1188 = vmul.f32 %v1185, %v1187
    %v1189 = vadd.f32 %v1185, %v1188
    %vm1190 = vweird.f32 %v1127
    %vm1191 = vweird.f32 %v1185
    %vm1192 = vmor %vm1190, %vm1191
    %v1193 = vsel %vm1192, %v1185, %v1189
    %v1194 = vand.u32 2147483647, %v1127
    %vm1195 = vcmp.eq.f32.partialorder %v1194, 8.507059e+37
    %v1196 = vand.u32 %v1127, 2147483648
    %v1197 = vor.u32 1.1754944e-38, %v1196
    %v1198 = vsel %vm1195, %v1197, %v1193
    %v1199 = vmul.f32 %v1090, %v1198
    %v1200 = vrcp.pop %v1128
    %v1201 = vmul.f32 %v1128, %v1200
    %v1202 = vsub.f32 1.0, %v1201
    %v1203 = vmul.f32 %v1200, %v1202
    %v1204 = vadd.f32 %v1200, %v1203
    %vm1205 = vweird.f32 %v1128
    %vm1206 = vweird.f32 %v1200
    %vm1207 = vmor %vm1205, %vm1206
    %v1208 = vsel %vm1207, %v1200, %v1204
    %v1209 = vand.u32 2147483647, %v1128
    %vm1210 = vcmp.eq.f32.partialorder %v1209, 8.507059e+37
    %v1211 = vand.u32 %v1128, 2147483648
    %v1212 = vor.u32 1.1754944e-38, %v1211
    %v1213 = vsel %vm1210, %v1212, %v1208
    %v1214 = vmul.f32 %v1097, %v1213
    %v1215 = vrcp.pop %v1129
    %v1216 = vmul.f32 %v1129, %v1215
    %v1217 = vsub.f32 1.0, %v1216
    %v1218 = vmul.f32 %v1215, %v1217
    %v1219 = vadd.f32 %v1215, %v1218
    %vm1220 = vweird.f32 %v1129
    %vm1221 = vweird.f32 %v1215
    %vm1222 = vmor %vm1220, %vm1221
    %v1223 = vsel %vm1222, %v1215, %v1219
    %v1224 = vand.u32 2147483647, %v1129
    %vm1225 = vcmp.eq.f32.partialorder %v1224, 8.507059e+37
    %v1226 = vand.u32 %v1129, 2147483648
    %v1227 = vor.u32 1.1754944e-38, %v1226
    %v1228 = vsel %vm1225, %v1227, %v1223
    %v1229 = vmul.f32 %v1104, %v1228
    %v1230 = vrcp.pop %v1130
    %v1231 = vmul.f32 %v1130, %v1230
    %v1232 = vsub.f32 1.0, %v1231
    %v1233 = vmul.f32 %v1230, %v1232
    %v1234 = vadd.f32 %v1230, %v1233
    %vm1235 = vweird.f32 %v1130
    %vm1236 = vweird.f32 %v1230
    %vm1237 = vmor %vm1235, %vm1236
    %v1238 = vsel %vm1237, %v1230, %v1234
    %v1239 = vand.u32 2147483647, %v1130
    %vm1240 = vcmp.eq.f32.partialorder %v1239, 8.507059e+37
    %v1241 = vand.u32 %v1130, 2147483648
    %v1242 = vor.u32 1.1754944e-38, %v1241
    %v1243 = vsel %vm1240, %v1242, %v1238
    %v1244 = vmul.f32 %v1111, %v1243
    %v1245 = vrcp.pop %v1131
    %v1246 = vmul.f32 %v1131, %v1245
    %v1247 = vsub.f32 1.0, %v1246
    %v1248 = vmul.f32 %v1245, %v1247
    %v1249 = vadd.f32 %v1245, %v1248
    %vm1250 = vweird.f32 %v1131
    %vm1251 = vweird.f32 %v1245
    %vm1252 = vmor %vm1250, %vm1251
    %v1253 = vsel %vm1252, %v1245, %v1249
    %v1254 = vand.u32 2147483647, %v1131
    %vm1255 = vcmp.eq.f32.partialorder %v1254, 8.507059e+37
    %v1256 = vand.u32 %v1131, 2147483648
    %v1257 = vor.u32 1.1754944e-38, %v1256
    %v1258 = vsel %vm1255, %v1257, %v1253
    %v1259 = vmul.f32 %v1118, %v1258
    %v1292 = vlaneseq
    %v1293 = vand.u32 %v1292, 127
    %v1294 = vperm.slane %v957, %v1293
    %v1295 = vadd.s32 %v1293, 4294967288
    %v1296 = vperm.slane %v958, %v1295
    %vm1297 = vcmask 130112
    %v1298 = vsel %vm1297, %v1296, %v1294
    %v1299 = vadd.s32 %v1293, 4294967280
    %v1300 = vperm.slane %v959, %v1299
    %vm1301 = vcmask 195712
    %v1302 = vsel %vm1301, %v1300, %v1298
    %v1303 = vadd.s32 %v1293, 4294967272
    %v1304 = vperm.slane %v960, %v1303
    %vm1305 = vcmask 261312
    %v1306 = vsel %vm1305, %v1304, %v1302
    %v1307 = vperm.slane %v961, %v1293
    %v1308 = vperm.slane %v962, %v1295
    %v1309 = vsel %vm1297, %v1308, %v1307
    %v1310 = vperm.slane %v963, %v1299
    %v1311 = vsel %vm1301, %v1310, %v1309
    %v1312 = vperm.slane %v964, %v1303
    %v1313 = vsel %vm1305, %v1312, %v1311
    %v1314 = vperm.slane %v965, %v1293
    %v1315 = vperm.slane %v966, %v1295
    %v1316 = vsel %vm1297, %v1315, %v1314
    %v1317 = vperm.slane %v967, %v1299
    %v1318 = vsel %vm1301, %v1317, %v1316
    %v1319 = vperm.slane %v968, %v1303
    %v1320 = vsel %vm1305, %v1319, %v1318
    %v1321 = vperm.slane %v969, %v1293
    %v1322 = vperm.slane %v970, %v1295
    %v1323 = vsel %vm1297, %v1322, %v1321
    %v1324 = vperm.slane %v971, %v1299
    %v1325 = vsel %vm1301, %v1324, %v1323
    %v1326 = vperm.slane %v972, %v1303
    %v1327 = vsel %vm1305, %v1326, %v1325
    %v1328 = vperm.slane %v973, %v1293
    %v1329 = vperm.slane %v974, %v1295
    %v1330 = vsel %vm1297, %v1329, %v1328
    %v1331 = vperm.slane %v975, %v1299
    %v1332 = vsel %vm1301, %v1331, %v1330
    %v1333 = vperm.slane %v976, %v1303
    %v1334 = vsel %vm1305, %v1333, %v1332
    %v1335 = vperm.slane %v977, %v1293
    %v1336 = vperm.slane %v978, %v1295
    %v1337 = vsel %vm1297, %v1336, %v1335
    %v1338 = vperm.slane %v979, %v1299
    %v1339 = vsel %vm1301, %v1338, %v1337
    %v1340 = vperm.slane %v980, %v1303
    %v1341 = vsel %vm1305, %v1340, %v1339
    %v1342 = vperm.slane %v981, %v1293
    %v1343 = vperm.slane %v982, %v1295
    %v1344 = vsel %vm1297, %v1343, %v1342
    %v1345 = vperm.slane %v983, %v1299
    %v1346 = vsel %vm1301, %v1345, %v1344
    %v1347 = vperm.slane %v984, %v1303
    %v1348 = vsel %vm1305, %v1347, %v1346
    %v1349 = vperm.slane %v985, %v1293
    %v1350 = vperm.slane %v986, %v1295
    %v1351 = vsel %vm1297, %v1350, %v1349
    %v1352 = vperm.slane %v987, %v1299
    %v1353 = vsel %vm1301, %v1352, %v1351
    %v1354 = vperm.slane %v988, %v1303
    %v1355 = vsel %vm1305, %v1354, %v1353
    %vm1356 = vcmask 1041409
    %v1357 = vsel %vm1356, %v1313, %v1306
    %vm1358 = vcmask 1042434
    %v1359 = vsel %vm1358, %v1320, %v1357
    %vm1360 = vcmask 1043459
    %v1361 = vsel %vm1360, %v1327, %v1359
    %vm1362 = vcmask 1044484
    %v1363 = vsel %vm1362, %v1334, %v1361
    %vm1364 = vcmask 1045509
    %v1365 = vsel %vm1364, %v1341, %v1363
    %vm1366 = vcmask 1046534
    %v1367 = vsel %vm1366, %v1348, %v1365
    %vm1368 = vcmask 1047559
    %v1369 = vsel %vm1368, %v1355, %v1367
    %v1379 = vrot.slane %v1169, 7
    %v1380 = vsel %vm1356, %v1379, %v1154
    %v1381 = vrot.slane %v1184, 6
    %v1382 = vsel %vm1358, %v1381, %v1380
    %v1383 = vrot.slane %v1199, 5
    %v1384 = vsel %vm1360, %v1383, %v1382
    %v1385 = vrot.slane %v1214, 4
    %v1386 = vsel %vm1362, %v1385, %v1384
    %v1387 = vrot.slane %v1229, 3
    %v1388 = vsel %vm1364, %v1387, %v1386
    %v1389 = vrot.slane %v1244, 2
    %v1390 = vsel %vm1366, %v1389, %v1388
    %v1391 = vrot.slane %v1259, 1
    %v1392 = vsel %vm1368, %v1391, %v1390
    %1393 = vrot.lane.b32.xlu0 %v1392, 32
    %v1394 = vpop.permute.xlu0 %1393
    %v1396 = vsel %vm1062, %v1369, %v1394
    %v1397 = vpack.c.bf16 %v1396, %v1396
    %v1398 = vld [vmem:[#allocation7] sm:$0xff]
    %v1399 = vld [vmem:[#allocation7 + $0x8] sm:$0xff]
    %v1400 = vld [vmem:[#allocation7 + $0x10] sm:$0xff]
    %v1401 = vld [vmem:[#allocation7 + $0x18] sm:$0xff]
    %v1402 = vld [vmem:[#allocation7 + $0x20] sm:$0xff]
    %v1403 = vld [vmem:[#allocation7 + $0x28] sm:$0xff]
    %v1404 = vld [vmem:[#allocation7 + $0x30] sm:$0xff]
    %v1405 = vld [vmem:[#allocation7 + $0x38] sm:$0xff]
    %v1414 = vunpack.c.l.b16 %v1398
    %v1415 = vunpack.c.h.b16 %v1398
    %v1416 = vunpack.c.l.b16 %v1399
    %v1417 = vunpack.c.h.b16 %v1399
    %v1418 = vunpack.c.l.b16 %v1400
    %v1419 = vunpack.c.h.b16 %v1400
    %v1420 = vunpack.c.l.b16 %v1401
    %v1421 = vunpack.c.h.b16 %v1401
    %v1422 = vunpack.c.l.b16 %v1402
    %v1423 = vunpack.c.h.b16 %v1402
    %v1424 = vunpack.c.l.b16 %v1403
    %v1425 = vunpack.c.h.b16 %v1403
    %v1426 = vunpack.c.l.b16 %v1404
    %v1427 = vunpack.c.h.b16 %v1404
    %v1428 = vunpack.c.l.b16 %v1405
    %v1429 = vunpack.c.h.b16 %v1405
    %v1430 = vpack.c.b16 %v1416, %v1414
    %v1431 = vpack.c.b16 %v1417, %v1415
    %v1432 = vpack.c.b16 %v1420, %v1418
    %v1433 = vpack.c.b16 %v1421, %v1419
    %v1434 = vpack.c.b16 %v1424, %v1422
    %v1435 = vpack.c.b16 %v1425, %v1423
    %v1436 = vpack.c.b16 %v1428, %v1426
    %v1437 = vpack.c.b16 %v1429, %v1427
    %vm1446 = vcmask 523264
    %v1448 = vsel %vm1446, %v1397, 0
    %1450 = vmatpush.bf16.msra.mxu0 0
    %1451 = vmatpush.bf16.msra.mxu0 0
    %1452 = vmatpush.bf16.msra.mxu0 0
    %1453 = vmatpush.bf16.msra.mxu0 0
    %1454 = vmatpush.bf16.msra.mxu0 %v1436
    %1455 = vmatpush.bf16.msra.mxu0 %v1434
    %1456 = vmatpush.bf16.msra.mxu0 %v1432
    %1457 = vmatpush.bf16.msra.mxu0 %v1430
    %1458 = vmatmul.bf16.gmra.mxu0 %v1448
    %v1459 = vpop.f32.mrf.mxu0
    %v1460 = vadd.f32 0.0, %v1459
    %v1461 = vpop.f32.mrf.mxu0
    %1462 = vdwg.mxu0
    %1463 = vmatpush.bf16.msra.mxu0 0
    %1464 = vmatpush.bf16.msra.mxu0 0
    %1465 = vmatpush.bf16.msra.mxu0 0
    %1466 = vmatpush.bf16.msra.mxu0 0
    %1467 = vmatpush.bf16.msra.mxu0 %v1437
    %1468 = vmatpush.bf16.msra.mxu0 %v1435
    %1469 = vmatpush.bf16.msra.mxu0 %v1433
    %1470 = vmatpush.bf16.msra.mxu0 %v1431
    %1471 = vmatmul.bf16.gmra.mxu0 %v1448
    %v1472 = vpop.f32.mrf.mxu0
    %v1473 = vadd.f32 0.0, %v1472
    %v1474 = vpop.f32.mrf.mxu0
    %1475 = vdwg.mxu0
    %1476 = vst [vmem:[#allocation8] sm:$0xff] %v1460
    %1477 = vst [vmem:[#allocation8 + $0x8] sm:$0xff] %v1473
    // Predicated region
    $region34: #{tpu_custom_call.1} parent=1 // pred_check
      _
    $region35: #{tpu_custom_call.1} parent=1 // pred_check_branch
      %1479 = sbr.rel (0) target = $region37
    $region36: #{tpu_custom_call.1} parent=1 // pred_region
      %1481 = vsyncadd [#allocation4], 0
      %s1483 = sshll.u32 [#allocation8], 4
      %s1484 = int_to_ptr.vmem [resolvable:$true] %s1483
      %s1485 = sshll.u32 %s5, 4
      %s1486 = int_to_ptr.hbm [resolvable:$true] %s1485
      %1488 = dma.vmem_to_hbm [thread:$0]  %s1484, 256, %s1486, [#allocation4]
    $region37: #{tpu_custom_call.1} parent=1 // pred_fallthru
      _
    // Predicated region
    $region38: #{tpu_custom_call.1} parent=1 // pred_check
      _
    $region39: #{tpu_custom_call.1} parent=1 // pred_check_branch
      %1490 = sbr.rel (0) target = $region41
    $region40: #{tpu_custom_call.1} parent=1 // pred_region
      %1492 = dma.done [#allocation4], 256
    $region41: #{tpu_custom_call.1} parent=1 // pred_fallthru
      _
    %1493 = vsyncpa [#allocation3], 1
    %1494 = vsyncpa [#allocation6], 1
    %1495 = vsyncpa [#allocation4], 1

</llo_original>
